<compile_context>
chip_gen: v5e
topology: v5e:2x2
jax: 0.10.0
libtpu: 0.0.40
codegen_flags: <defaults>
</compile_context>

<pallas_src>
import jax
import jax.numpy as jnp
import numpy as np
from jax import lax
from jax.experimental import pallas as pl
from jax.experimental.pallas import tpu as pltpu


def _round_up(x, m):
    return ((x + m - 1) // m) * m


# ---------------------------------------------------------------------------
# Kernels
# ---------------------------------------------------------------------------
def _patch_embed_kernel_single_k(x_ref, w_ref, b_ref, o_ref):
    """Whole reduction in one MXU pass: fused matmul + bias + cast/store."""
    acc = jnp.dot(x_ref[...], w_ref[...], preferred_element_type=jnp.float32)
    o_ref[...] = (acc + b_ref[...]).astype(o_ref.dtype)


def _patch_embed_kernel_multi_k(x_ref, w_ref, b_ref, o_ref, acc_ref):
    """K is tiled: f32 VMEM accumulator, bias folded at k==0, store at last k."""
    k = pl.program_id(1)

    @pl.when(k == 0)
    def _():
        acc_ref[...] = jnp.broadcast_to(b_ref[...], acc_ref.shape)

    acc_ref[...] += jnp.dot(
        x_ref[...], w_ref[...], preferred_element_type=jnp.float32
    )

    @pl.when(k == pl.num_programs(1) - 1)
    def _():
        o_ref[...] = acc_ref[...].astype(o_ref.dtype)


# ---------------------------------------------------------------------------
# Tiling heuristics
# ---------------------------------------------------------------------------
_VMEM_WORKING_SET_BUDGET = 36 * 1024 * 1024   # fits v5e/v6e/v7x with headroom


def _choose_tiles(M, K_pad, E_pad, out_itemsize):
    # K tile: single MXU pass when it fits, else the largest multiple of 128
    # (<= 2048) dividing K_pad -> fewest accumulator RMW / weight re-fetches.
    if K_pad <= 2048:
        tk = K_pad
    else:
        tk = 2048
        while K_pad % tk:
            tk -= 128
    multi_k = K_pad > tk

    # Largest tm whose double-buffered tiles (+ f32 acc scratch when K is
    # tiled) fit the cross-generation VMEM budget.
    fixed = 2 * tk * E_pad * 2                        # weight tile x 2 buffers
    per_row = 2 * (tk * 2 + E_pad * out_itemsize)     # x + out tiles x 2 buffers
    if multi_k:
        per_row += E_pad * 4                          # f32 accumulator scratch
    tm_vmem = max(8, (_VMEM_WORKING_SET_BUDGET - fixed) // per_row)
    tm_target = min(2048, tm_vmem)

    # Keep >= 2 M tiles whenever M allows it so the "parallel" axis can be
    # sharded across v7x's two TensorCores (no-op on single-TC v5e/v6e).
    M8 = _round_up(max(M, 1), 8)
    grid_m = max(2 if M8 >= 16 else 1, pl.cdiv(M8, tm_target))
    tm = _round_up(pl.cdiv(M, grid_m), 8)
    M_pad = tm * grid_m
    return tm, tk, M_pad, multi_k


# ---------------------------------------------------------------------------
# Pallas wrapper
# ---------------------------------------------------------------------------
def patch_embed_matmul(x_patches, w_flat, bias, out_dtype):
    """x_patches: (M, K), w_flat: (K, E), bias: (E,) -> (M, E) in out_dtype."""
    M, K = x_patches.shape
    Kw, E = w_flat.shape
    assert Kw == K

    E_pad = _round_up(E, 128)          # lane-dense (unmasked) output stores
    K_pad = _round_up(K, 128)
    out_itemsize = jnp.dtype(out_dtype).itemsize
    tm, tk, M_pad, multi_k = _choose_tiles(M, K_pad, E_pad, out_itemsize)

    # bf16 MXU operands (f32 accumulation inside the kernel); zero padding is
    # inert.  With allow_input_fusion below, XLA may fuse this cast/pad (and
    # the upstream patch transpose) into the kernel's operand-0 DMA when the
    # forward is jitted, avoiding an extra HBM materialization of x.
    xp = jnp.pad(x_patches.astype(jnp.bfloat16),
                 ((0, M_pad - M), (0, K_pad - K)))
    wp = jnp.pad(w_flat.astype(jnp.bfloat16),
                 ((0, K_pad - K), (0, E_pad - E)))
    bp = jnp.pad(bias.astype(jnp.float32).reshape(1, E),
                 ((0, 0), (0, E_pad - E)))

    # Explicit VMEM limit: working set + headroom, clamped to a range valid on
    # every generation (>= 32 MiB scoped default, <= 48 MiB < v7x's 64 MiB).
    working_set = (2 * (tm * tk * 2 + tk * E_pad * 2 + tm * E_pad * out_itemsize)
                   + (tm * E_pad * 4 if multi_k else 0))
    vmem_limit = int(min(48 << 20, max(32 << 20, working_set + (4 << 20))))

    if not multi_k:
        out = pl.pallas_call(
            _patch_embed_kernel_single_k,
            out_shape=jax.ShapeDtypeStruct((M_pad, E_pad), out_dtype),
            grid_spec=pltpu.PrefetchScalarGridSpec(
                num_scalar_prefetch=0,
                grid=(M_pad // tm,),
                in_specs=[
                    pl.BlockSpec((tm, K_pad), lambda i: (i, 0)),
                    pl.BlockSpec((K_pad, E_pad), lambda i: (0, 0)),
                    pl.BlockSpec((1, E_pad), lambda i: (0, 0)),
                ],
                out_specs=pl.BlockSpec((tm, E_pad), lambda i: (i, 0)),
            ),
            compiler_params=pltpu.CompilerParams(
                dimension_semantics=("parallel",),
                vmem_limit_bytes=vmem_limit,
                allow_input_fusion=[True, False, False],
            ),
        )(xp, wp, bp)
    else:
        out = pl.pallas_call(
            _patch_embed_kernel_multi_k,
            out_shape=jax.ShapeDtypeStruct((M_pad, E_pad), out_dtype),
            grid_spec=pltpu.PrefetchScalarGridSpec(
                num_scalar_prefetch=0,
                grid=(M_pad // tm, K_pad // tk),
                in_specs=[
                    pl.BlockSpec((tm, tk), lambda i, k: (i, k)),
                    pl.BlockSpec((tk, E_pad), lambda i, k: (k, 0)),
                    pl.BlockSpec((1, E_pad), lambda i, k: (0, 0)),
                ],
                out_specs=pl.BlockSpec((tm, E_pad), lambda i, k: (i, 0)),
                scratch_shapes=[pltpu.VMEM((tm, E_pad), jnp.float32)],
            ),
            compiler_params=pltpu.CompilerParams(
                dimension_semantics=("parallel", "arbitrary"),
                vmem_limit_bytes=vmem_limit,
                allow_input_fusion=[True, False, False],
            ),
        )(xp, wp, bp)

    return out[:M, :E]


def patch_embed_forward(x, weight, bias, patch_size):
    """Forward pass of PatchEmbed.

    x:      (B, C, H, W, D)   -- PyTorch NCHWD layout
    weight: (E, C, p, p, p)   -- Conv3d weight
    bias:   (E,)              -- Conv3d bias
    returns (x_out, (Hp, Wp, Dp)) with x_out: (B, Hp*Wp*Dp, E)
    """
    B, C, H, W, D = x.shape
    p = patch_size
    E = weight.shape[0]
    Hp, Wp, Dp = H // p, W // p, D // p

    # Patch extraction (layout glue): (B, C, H, W, D) -> (M, K).  Offered to
    # XLA for fusion into the kernel's operand-0 read (allow_input_fusion).
    # TODO(synk): fully-manual alternative is streaming untransposed
    # (1, C, p, W, D) slabs via BlockSpec and rearranging in VMEM; only worth
    # it if XLA declines this input fusion.
    xp = x.reshape(B, C, Hp, p, Wp, p, Dp, p)
    xp = xp.transpose(0, 2, 4, 6, 1, 3, 5, 7)            # (B, Hp, Wp, Dp, C, p, p, p)
    xp = xp.reshape(B * Hp * Wp * Dp, C * p * p * p)     # (M, K)

    # Weight flattening: (E, C, p, p, p) -> (K, E); tiny, done once.
    w_flat = weight.reshape(E, C * p * p * p).T

    out = patch_embed_matmul(xp, w_flat, bias, out_dtype=x.dtype)   # (M, E) on MXU
    out = out.reshape(B, Hp * Wp * Dp, E)                # == flatten(2).transpose(1, 2)
    return out, (Hp, Wp, Dp)


if __name__ == "__main__":
    # Small, forward-consistent shapes: img_size=16, patch_size=8, in_chans=1,
    # embed_dim=32  ->  num_patches = (16//8)**3 = 8, K = 1*8*8*8 = 512.
    B, C, H, W, D = 2, 1, 16, 16, 16
    patch_size = 8
    embed_dim = 32

    key = jax.random.PRNGKey(0)
    kx, kw, kb = jax.random.split(key, 3)
    x = jax.random.normal(kx, (B, C, H, W, D), dtype=jnp.float32)
    weight = (
        jax.random.normal(kw, (embed_dim, C, patch_size, patch_size, patch_size),
                          dtype=jnp.float32) * 0.02
    )
    bias = jax.random.normal(kb, (embed_dim,), dtype=jnp.float32) * 0.02

    # Jit the whole forward so the patch transpose/cast/pad producers sit in
    # the same XLA computation as the pallas_call and can be input-fused.
    fwd = jax.jit(patch_embed_forward, static_argnums=(3,))
    out, (Hp, Wp, Dp) = fwd(x, weight, bias, patch_size)
    out = jax.block_until_ready(out)
    Hp, Wp, Dp = int(Hp), int(Wp), int(Dp)

    # Reference: exact f32 strided 3D conv (Conv3d semantics) + flatten/transpose.
    ref = lax.conv_general_dilated(
        x, weight,
        window_strides=(patch_size, patch_size, patch_size),
        padding="VALID",
        dimension_numbers=("NCHWD", "OIHWD", "NCHWD"),
        precision=lax.Precision.HIGHEST,
    ) + bias.reshape(1, embed_dim, 1, 1, 1)
    ref = ref.reshape(B, embed_dim, Hp * Wp * Dp).transpose(0, 2, 1)

    assert out.shape == (B, Hp * Wp * Dp, embed_dim)
    assert (Hp, Wp, Dp) == (H // patch_size, W // patch_size, D // patch_size)
    # bf16 operands with f32 accumulation -> loose-but-tight-enough tolerance.
    np.testing.assert_allclose(np.asarray(out), np.asarray(ref), rtol=2e-2, atol=2e-2)

    print("KERNEL_OK")
</pallas_src>

<mosaic_0001>
module attributes {stable_mosaic.version = 11 : i64} {
  func.func @_patch_embed_kernel_single_k(%arg0: i32, %arg1: memref<8x512xbf16, #tpu.memory_space<vmem>>, %arg2: memref<512x128xbf16, #tpu.memory_space<vmem>>, %arg3: memref<1x128xf32, #tpu.memory_space<vmem>>, %arg4: memref<8x128xf32, #tpu.memory_space<vmem>>) attributes {dimension_semantics = [#tpu.dimension_semantics<parallel>], iteration_bounds = array<i64: 2>, scalar_prefetch = 0 : i64, scratch_operands = 0 : i64, tpu.core_type = #tpu.core_type<tc>, window_params = [{transform_indices = @transform_0, window_bounds = array<i64: 8, 512>}, {pipeline_mode = #tpu.pipeline_mode<synchronous>, transform_indices = @transform_1, window_bounds = array<i64: 512, 128>}, {pipeline_mode = #tpu.pipeline_mode<synchronous>, transform_indices = @transform_2, window_bounds = array<i64: 1, 128>}, {transform_indices = @transform_3, window_bounds = array<i64: 8, 128>}]} {
    %c0 = arith.constant 0 : index
    %c0_0 = arith.constant 0 : index
    %0 = vector.load %arg1[%c0, %c0_0] : memref<8x512xbf16, #tpu.memory_space<vmem>>, vector<8x512xbf16>
    %c0_1 = arith.constant 0 : index
    %c0_2 = arith.constant 0 : index
    %1 = vector.load %arg2[%c0_1, %c0_2] : memref<512x128xbf16, #tpu.memory_space<vmem>>, vector<512x128xbf16>
    %cst = arith.constant dense<0.000000e+00> : vector<8x128xf32>
    %2 = tpu.matmul %0, %1, %cst {dimension_numbers = #tpu.dot_dimension_numbers<[1], [0], [0], [1], [0, 0, 1, 1], [], []>} : vector<8x512xbf16>, vector<512x128xbf16>, vector<8x128xf32> -> vector<8x128xf32>
    %c0_3 = arith.constant 0 : index
    %c0_4 = arith.constant 0 : index
    %3 = vector.load %arg3[%c0_3, %c0_4] : memref<1x128xf32, #tpu.memory_space<vmem>>, vector<1x128xf32>
    %4 = vector.broadcast %3 : vector<1x128xf32> to vector<8x128xf32>
    %5 = arith.addf %2, %4 : vector<8x128xf32>
    %c0_5 = arith.constant 0 : index
    %c0_6 = arith.constant 0 : index
    %6 = vector.load %arg4[%c0_5, %c0_6] : memref<8x128xf32, #tpu.memory_space<vmem>>, vector<8x128xf32>
    tpu.vector_store %arg4[%c0_5, %c0_6], %5 {strides = array<i32>} : memref<8x128xf32, #tpu.memory_space<vmem>>, vector<8x128xf32>,
    return
  }
  func.func @transform_0(%arg0: i32) -> (i32, i32) {
    %c0_i32 = arith.constant 0 : i32
    %c0_i32_0 = arith.constant 0 : i32
    return %arg0, %c0_i32 : i32, i32
  }
  func.func @transform_1(%arg0: i32) -> (i32, i32) {
    %c0_i32 = arith.constant 0 : i32
    %c0_i32_0 = arith.constant 0 : i32
    %c0_i32_1 = arith.constant 0 : i32
    return %c0_i32, %c0_i32_0 : i32, i32
  }
  func.func @transform_2(%arg0: i32) -> (i32, i32) {
    %c0_i32 = arith.constant 0 : i32
    %c0_i32_0 = arith.constant 0 : i32
    %c0_i32_1 = arith.constant 0 : i32
    return %c0_i32, %c0_i32_0 : i32, i32
  }
  func.func @transform_3(%arg0: i32) -> (i32, i32) {
    %c0_i32 = arith.constant 0 : i32
    %c0_i32_0 = arith.constant 0 : i32
    return %arg0, %c0_i32 : i32, i32
  }
}

</mosaic_0001>

<llo_original>
// kernel: patch_embed_forward.1
$region0: #{patch_embed_forward.1}
  #allocation0 [shape = 'u32[]', space=smem, size = 0x4, offset = 0x4, fixed_abs, tag = 'smem constant byte address 0x4 - core index']
  #allocation1 [shape = 'u32[72,128]{1,0:T(1,128)}', space=vmem, size = 0x9000, scoped, tag = 'internal scratch']
  %s0 = inlined_call_operand.vmem [shape: bf16[16,512], index: 0, kind: input, shape index: {}]
  %s1 = inlined_call_operand.vmem [shape: bf16[512,128], index: 1, kind: input, shape index: {}]
  %s2 = inlined_call_operand.vmem [shape: f32[1,128], index: 2, kind: input, shape index: {}]
  %s3 = inlined_call_operand.vmem [shape: f32[16,128], index: 3, kind: output, shape index: {}]
  %s4 = sld [smem:[#allocation0]]
  $region45: #{patch_embed_forward.1} parent=0
    _
  %s6 = ssub.s32 1, %s4
  %s7 = scalar_select 0, %s6, %s4
  loop: start=0, step=1, limit=4
  $region2: #{patch_embed_forward.1} parent=0 // loop_pre_header
    _
  $region3: #{patch_embed_forward.1} parent=0 // loop_header
    %s9 = sphi 0, %s13
    %p10 = scmp.ge.s32.totalorder %s9, 4
    %s19 = sphi 0, %s21
    %s22 = sphi 0, %s19
    %s23 = sphi 0, %s22
    %s39 = sphi 0, %s23
    %s43 = sphi 0, %s43
    %s45 = sphi 0, %s43
    %s46 = sphi 0, %s45
    %s60 = sphi 0, %s46
    %s64 = sphi 0, %s64
    %s66 = sphi 0, %s64
    %s67 = sphi 0, %s66
    %s81 = sphi 0, %s67
    %s87 = sphi 0, %s89
    %s90 = sphi 0, %s87
    %s91 = sphi 0, %s90
    %s107 = sphi 0, %s91
  $region4: #{patch_embed_forward.1} parent=0 // loop_header_branch
    %12 = sbr.rel (%p10) target = $region8
  $region5: #{patch_embed_forward.1} parent=0 // loop_body
    %s14 = ssub.s32 %s9, 1
    %s15 = ssub.s32 %s9, 2
    %s16 = sadd.s32 %s9, 1
    %s17 = ssub.s32 %s9, %s16
    %p18 = scmp.eq.s32.totalorder %s17, 0
    %s20 = sadd.s32 %s19, 1
    %s21 = scalar_select %p18, %s19, %s20
    %p24 = pneg %p18
    %p25 = scmp.eq.s32.totalorder %s9, 1
    %p26 = por %p24, %p25
    %p27 = scmp.ne.s32.totalorder %s19, %s22
    %p28 = scmp.eq.s32.totalorder %s9, 0
    %p29 = por %p27, %p28
    %p30 = scmp.ne.s32.totalorder %s19, %s22
    %p31 = scmp.eq.s32.totalorder %s14, 1
    %p32 = por %p30, %p31
    %p33 = scmp.ne.s32.totalorder %s22, %s23
    %p34 = scmp.eq.s32.totalorder %s14, 0
    %p35 = por %p33, %p34
    %p36 = scmp.ne.s32.totalorder %s22, %s23
    %p37 = scmp.eq.s32.totalorder %s15, 1
    %p38 = por %p36, %p37
    %p40 = scmp.ne.s32.totalorder %s23, %s39
    %p41 = scmp.eq.s32.totalorder %s15, 0
    %p42 = por %p40, %p41
    %s44 = sadd.s32 %s43, 1
    %p47 = scmp.eq.s32.totalorder %s9, 1
    %p48 = scmp.ne.s32.totalorder %s43, %s45
    %p49 = scmp.eq.s32.totalorder %s9, 0
    %p50 = por %p48, %p49
    %p51 = scmp.ne.s32.totalorder %s43, %s45
    %p52 = scmp.eq.s32.totalorder %s14, 1
    %p53 = por %p51, %p52
    %p54 = scmp.ne.s32.totalorder %s45, %s46
    %p55 = scmp.eq.s32.totalorder %s14, 0
    %p56 = por %p54, %p55
    %p57 = scmp.ne.s32.totalorder %s45, %s46
    %p58 = scmp.eq.s32.totalorder %s15, 1
    %p59 = por %p57, %p58
    %p61 = scmp.ne.s32.totalorder %s46, %s60
    %p62 = scmp.eq.s32.totalorder %s15, 0
    %p63 = por %p61, %p62
    %s65 = sadd.s32 %s64, 1
    %p68 = scmp.eq.s32.totalorder %s9, 1
    %p69 = scmp.ne.s32.totalorder %s64, %s66
    %p70 = scmp.eq.s32.totalorder %s9, 0
    %p71 = por %p69, %p70
    %p72 = scmp.ne.s32.totalorder %s64, %s66
    %p73 = scmp.eq.s32.totalorder %s14, 1
    %p74 = por %p72, %p73
    %p75 = scmp.ne.s32.totalorder %s66, %s67
    %p76 = scmp.eq.s32.totalorder %s14, 0
    %p77 = por %p75, %p76
    %p78 = scmp.ne.s32.totalorder %s66, %s67
    %p79 = scmp.eq.s32.totalorder %s15, 1
    %p80 = por %p78, %p79
    %p82 = scmp.ne.s32.totalorder %s67, %s81
    %p83 = scmp.eq.s32.totalorder %s15, 0
    %p84 = por %p82, %p83
    %s85 = ssub.s32 %s9, %s16
    %p86 = scmp.eq.s32.totalorder %s85, 0
    %s88 = sadd.s32 %s87, 1
    %s89 = scalar_select %p86, %s87, %s88
    %p92 = pneg %p86
    %p93 = scmp.eq.s32.totalorder %s9, 1
    %p94 = por %p92, %p93
    %p95 = scmp.ne.s32.totalorder %s87, %s90
    %p96 = scmp.eq.s32.totalorder %s9, 0
    %p97 = por %p95, %p96
    %p98 = scmp.ne.s32.totalorder %s87, %s90
    %p99 = scmp.eq.s32.totalorder %s14, 1
    %p100 = por %p98, %p99
    %p101 = scmp.ne.s32.totalorder %s90, %s91
    %p102 = scmp.eq.s32.totalorder %s14, 0
    %p103 = por %p101, %p102
    %p104 = scmp.ne.s32.totalorder %s90, %s91
    %p105 = scmp.eq.s32.totalorder %s15, 1
    %p106 = por %p104, %p105
    %p108 = scmp.ne.s32.totalorder %s91, %s107
    %p109 = scmp.eq.s32.totalorder %s15, 0
    %p110 = por %p108, %p109
    %p111 = scmp.le.s32.totalorder 1, %s9
    %p112 = scmp.lt.s32.totalorder %s9, 3
    %p113 = pnand %p111, %p112
    %p114 = pneg %p113
    // Predicated region
    $region9: #{patch_embed_forward.1} parent=5 // pred_check
      _
    $region10: #{patch_embed_forward.1} parent=5 // pred_check_branch
      %116 = sbr.rel (%p113) target = $region12
    $region11: #{patch_embed_forward.1} parent=5 // pred_region
      %s117 = ssub.s32 %s9, 1
      // Predicated region
      $region13: #{patch_embed_forward.1} parent=11 // pred_check
        %p118 = pneg %p56
      $region14: #{patch_embed_forward.1} parent=11 // pred_check_branch
        %120 = sbr.rel (%p118) target = $region16
      $region15: #{patch_embed_forward.1} parent=11 // pred_region
        _
      $region16: #{patch_embed_forward.1} parent=11 // pred_fallthru
        _
      // Predicated region
      $region17: #{patch_embed_forward.1} parent=11 // pred_check
        %p121 = pneg %p77
      $region18: #{patch_embed_forward.1} parent=11 // pred_check_branch
        %123 = sbr.rel (%p121) target = $region20
      $region19: #{patch_embed_forward.1} parent=11 // pred_region
        _
      $region20: #{patch_embed_forward.1} parent=11 // pred_fallthru
        _
    $region12: #{patch_embed_forward.1} parent=5 // pred_fallthru
      _
    %p124 = scmp.lt.s32.totalorder %s9, 2
    // Predicated region
    $region21: #{patch_embed_forward.1} parent=5 // pred_check
      %p125 = pneg %p124
    $region22: #{patch_embed_forward.1} parent=5 // pred_check_branch
      %127 = sbr.rel (%p125) target = $region24
    $region23: #{patch_embed_forward.1} parent=5 // pred_region
      // Predicated region
      $region25: #{patch_embed_forward.1} parent=23 // pred_check
        %p128 = pneg %p29
      $region26: #{patch_embed_forward.1} parent=23 // pred_check_branch
        %130 = sbr.rel (%p128) target = $region28
      $region27: #{patch_embed_forward.1} parent=23 // pred_region
        %p131 = scmp.lt.s32.totalorder %s9, 1
        %s132 = scalar_select %p131, %s9, 1
        %s133 = smul.addr %s132, 4
        %s134 = smul.addr %s133, 4
        %s135 = scalar_lea.vmem %s0, %s134
      $region28: #{patch_embed_forward.1} parent=23 // pred_fallthru
        _
    $region24: #{patch_embed_forward.1} parent=5 // pred_fallthru
      _
    %p136 = scmp.le.s32.totalorder 1, %s9
    %p137 = scmp.lt.s32.totalorder %s9, 3
    %p138 = pnand %p136, %p137
    %p139 = pneg %p138
    // Predicated region
    $region29: #{patch_embed_forward.1} parent=5 // pred_check
      _
    $region30: #{patch_embed_forward.1} parent=5 // pred_check_branch
      %141 = sbr.rel (%p138) target = $region32
    $region31: #{patch_embed_forward.1} parent=5 // pred_region
      %s142 = ssub.s32 %s9, 1
      %p143 = scmp.lt.s32.totalorder %s14, 1
      %s144 = scalar_select %p143, %s14, 1
      %s145 = smul.addr %s144, 4
      %s146 = smul.addr %s145, 4
      %s147 = scalar_lea.vmem %s0, %s146
      %p148 = pneg %p35
      %p149 = pneg %p32
      %p150 = pneg %p56
      %p151 = pneg %p53
      %p152 = pneg %p77
      %p153 = pneg %p74
      %p154 = pneg %p103
      %p155 = pneg %p100
      %p156 = scmp.lt.s32.totalorder %s14, 1
      %s157 = scalar_select %p156, %s14, 1
      %s158 = smul.addr %s157, 8
      %s159 = scalar_lea.vmem %s3, %s158
      %p160 = scmp.lt.s32.totalorder %s14, 1
      %s161 = scalar_select %p160, %s14, 1
      %s162 = smul.addr %s161, 4
      %s163 = smul.addr %s162, 4
      %s164 = scalar_lea.vmem %s0, %s163
      %p165 = scmp.lt.s32.totalorder %s14, 1
      %s166 = scalar_select %p165, %s14, 1
      %s167 = smul.addr %s166, 8
      %s168 = scalar_lea.vmem %s3, %s167
      %v169 = vld [vmem:[%s164] sm:$0xff]
      %v170 = vld [vmem:[%s164 + $0x8] sm:$0xff]
      %v171 = vld [vmem:[%s1] sm:$0xf]
      %v172 = vld [vmem:[%s1 + $0x4] sm:$0xf]
      %v173 = vld [vmem:[%s1 + $0x8] sm:$0xf]
      %v174 = vld [vmem:[%s1 + $0xc] sm:$0xf]
      %v175 = vld [vmem:[%s1 + $0x10] sm:$0xf]
      %v176 = vld [vmem:[%s1 + $0x14] sm:$0xf]
      %v177 = vld [vmem:[%s1 + $0x18] sm:$0xf]
      %v178 = vld [vmem:[%s1 + $0x1c] sm:$0xf]
      %v179 = vld [vmem:[%s1 + $0x20] sm:$0xf]
      %v180 = vld [vmem:[%s1 + $0x24] sm:$0xf]
      %v181 = vld [vmem:[%s1 + $0x28] sm:$0xf]
      %v182 = vld [vmem:[%s1 + $0x2c] sm:$0xf]
      %v183 = vld [vmem:[%s1 + $0x30] sm:$0xf]
      %v184 = vld [vmem:[%s1 + $0x34] sm:$0xf]
      %v185 = vld [vmem:[%s1 + $0x38] sm:$0xf]
      %v186 = vld [vmem:[%s1 + $0x3c] sm:$0xf]
      %v187 = vld [vmem:[%s1 + $0x40] sm:$0xf]
      %v188 = vld [vmem:[%s1 + $0x44] sm:$0xf]
      %v189 = vld [vmem:[%s1 + $0x48] sm:$0xf]
      %v190 = vld [vmem:[%s1 + $0x4c] sm:$0xf]
      %v191 = vld [vmem:[%s1 + $0x50] sm:$0xf]
      %v192 = vld [vmem:[%s1 + $0x54] sm:$0xf]
      %v193 = vld [vmem:[%s1 + $0x58] sm:$0xf]
      %v194 = vld [vmem:[%s1 + $0x5c] sm:$0xf]
      %v195 = vld [vmem:[%s1 + $0x60] sm:$0xf]
      %v196 = vld [vmem:[%s1 + $0x64] sm:$0xf]
      %v197 = vld [vmem:[%s1 + $0x68] sm:$0xf]
      %v198 = vld [vmem:[%s1 + $0x6c] sm:$0xf]
      %v199 = vld [vmem:[%s1 + $0x70] sm:$0xf]
      %v200 = vld [vmem:[%s1 + $0x74] sm:$0xf]
      %v201 = vld [vmem:[%s1 + $0x78] sm:$0xf]
      %v202 = vld [vmem:[%s1 + $0x7c] sm:$0xf]
      %v203 = vld [vmem:[%s1 + $0x80] sm:$0xf]
      %v204 = vld [vmem:[%s1 + $0x84] sm:$0xf]
      %v205 = vld [vmem:[%s1 + $0x88] sm:$0xf]
      %v206 = vld [vmem:[%s1 + $0x8c] sm:$0xf]
      %v207 = vld [vmem:[%s1 + $0x90] sm:$0xf]
      %v208 = vld [vmem:[%s1 + $0x94] sm:$0xf]
      %v209 = vld [vmem:[%s1 + $0x98] sm:$0xf]
      %v210 = vld [vmem:[%s1 + $0x9c] sm:$0xf]
      %v211 = vld [vmem:[%s1 + $0xa0] sm:$0xf]
      %v212 = vld [vmem:[%s1 + $0xa4] sm:$0xf]
      %v213 = vld [vmem:[%s1 + $0xa8] sm:$0xf]
      %v214 = vld [vmem:[%s1 + $0xac] sm:$0xf]
      %v215 = vld [vmem:[%s1 + $0xb0] sm:$0xf]
      %v216 = vld [vmem:[%s1 + $0xb4] sm:$0xf]
      %v217 = vld [vmem:[%s1 + $0xb8] sm:$0xf]
      %v218 = vld [vmem:[%s1 + $0xbc] sm:$0xf]
      %v219 = vld [vmem:[%s1 + $0xc0] sm:$0xf]
      %v220 = vld [vmem:[%s1 + $0xc4] sm:$0xf]
      %v221 = vld [vmem:[%s1 + $0xc8] sm:$0xf]
      %v222 = vld [vmem:[%s1 + $0xcc] sm:$0xf]
      %v223 = vld [vmem:[%s1 + $0xd0] sm:$0xf]
      %v224 = vld [vmem:[%s1 + $0xd4] sm:$0xf]
      %v225 = vld [vmem:[%s1 + $0xd8] sm:$0xf]
      %v226 = vld [vmem:[%s1 + $0xdc] sm:$0xf]
      %v227 = vld [vmem:[%s1 + $0xe0] sm:$0xf]
      %v228 = vld [vmem:[%s1 + $0xe4] sm:$0xf]
      %v229 = vld [vmem:[%s1 + $0xe8] sm:$0xf]
      %v230 = vld [vmem:[%s1 + $0xec] sm:$0xf]
      %v231 = vld [vmem:[%s1 + $0xf0] sm:$0xf]
      %v232 = vld [vmem:[%s1 + $0xf4] sm:$0xf]
      %v233 = vld [vmem:[%s1 + $0xf8] sm:$0xf]
      %v234 = vld [vmem:[%s1 + $0xfc] sm:$0xf]
      %v235 = vld [vmem:[%s2] sm:$0x1]
      %v237 = vperm.slane %v235, 0
      %v241 = vunpack.c.l.b16 %v169
      %v242 = vunpack.c.h.b16 %v169
      %v243 = vunpack.c.l.b16 %v170
      %v244 = vunpack.c.h.b16 %v170
      %v245 = vpack.c.b16 %v241, %v241
      %v246 = vpack.c.b16 %v242, %v242
      %v247 = vpack.c.b16 %v243, %v243
      %v248 = vpack.c.b16 %v244, %v244
      %v317 = vunpack.c.l.b16 %v171
      %v318 = vunpack.c.l.b16 %v172
      %v319 = vunpack.c.l.b16 %v173
      %v320 = vunpack.c.l.b16 %v174
      %v321 = vunpack.c.l.b16 %v175
      %v322 = vunpack.c.l.b16 %v176
      %v323 = vunpack.c.l.b16 %v177
      %v324 = vunpack.c.l.b16 %v178
      %v325 = vunpack.c.l.b16 %v179
      %v326 = vunpack.c.l.b16 %v180
      %v327 = vunpack.c.l.b16 %v181
      %v328 = vunpack.c.l.b16 %v182
      %v329 = vunpack.c.l.b16 %v183
      %v330 = vunpack.c.l.b16 %v184
      %v331 = vunpack.c.l.b16 %v185
      %v332 = vunpack.c.l.b16 %v186
      %v333 = vunpack.c.l.b16 %v187
      %v334 = vunpack.c.l.b16 %v188
      %v335 = vunpack.c.l.b16 %v189
      %v336 = vunpack.c.l.b16 %v190
      %v337 = vunpack.c.l.b16 %v191
      %v338 = vunpack.c.l.b16 %v192
      %v339 = vunpack.c.l.b16 %v193
      %v340 = vunpack.c.l.b16 %v194
      %v341 = vunpack.c.l.b16 %v195
      %v342 = vunpack.c.l.b16 %v196
      %v343 = vunpack.c.l.b16 %v197
      %v344 = vunpack.c.l.b16 %v198
      %v345 = vunpack.c.l.b16 %v199
      %v346 = vunpack.c.l.b16 %v200
      %v347 = vunpack.c.l.b16 %v201
      %v348 = vunpack.c.l.b16 %v202
      %v349 = vunpack.c.l.b16 %v203
      %v350 = vunpack.c.l.b16 %v204
      %v351 = vunpack.c.l.b16 %v205
      %v352 = vunpack.c.l.b16 %v206
      %v353 = vunpack.c.l.b16 %v207
      %v354 = vunpack.c.l.b16 %v208
      %v355 = vunpack.c.l.b16 %v209
      %v356 = vunpack.c.l.b16 %v210
      %v357 = vunpack.c.l.b16 %v211
      %v358 = vunpack.c.l.b16 %v212
      %v359 = vunpack.c.l.b16 %v213
      %v360 = vunpack.c.l.b16 %v214
      %v361 = vunpack.c.l.b16 %v215
      %v362 = vunpack.c.l.b16 %v216
      %v363 = vunpack.c.l.b16 %v217
      %v364 = vunpack.c.l.b16 %v218
      %v365 = vunpack.c.l.b16 %v219
      %v366 = vunpack.c.l.b16 %v220
      %v367 = vunpack.c.l.b16 %v221
      %v368 = vunpack.c.l.b16 %v222
      %v369 = vunpack.c.l.b16 %v223
      %v370 = vunpack.c.l.b16 %v224
      %v371 = vunpack.c.l.b16 %v225
      %v372 = vunpack.c.l.b16 %v226
      %v373 = vunpack.c.l.b16 %v227
      %v374 = vunpack.c.l.b16 %v228
      %v375 = vunpack.c.l.b16 %v229
      %v376 = vunpack.c.l.b16 %v230
      %v377 = vunpack.c.l.b16 %v231
      %v378 = vunpack.c.l.b16 %v232
      %v379 = vunpack.c.l.b16 %v233
      %v380 = vunpack.c.l.b16 %v234
      %v381 = vpack.c.b16 %v318, %v317
      %v382 = vpack.c.b16 %v320, %v319
      %v383 = vpack.c.b16 %v322, %v321
      %v384 = vpack.c.b16 %v324, %v323
      %v385 = vpack.c.b16 %v326, %v325
      %v386 = vpack.c.b16 %v328, %v327
      %v387 = vpack.c.b16 %v330, %v329
      %v388 = vpack.c.b16 %v332, %v331
      %v389 = vpack.c.b16 %v334, %v333
      %v390 = vpack.c.b16 %v336, %v335
      %v391 = vpack.c.b16 %v338, %v337
      %v392 = vpack.c.b16 %v340, %v339
      %v393 = vpack.c.b16 %v342, %v341
      %v394 = vpack.c.b16 %v344, %v343
      %v395 = vpack.c.b16 %v346, %v345
      %v396 = vpack.c.b16 %v348, %v347
      %v397 = vpack.c.b16 %v350, %v349
      %v398 = vpack.c.b16 %v352, %v351
      %v399 = vpack.c.b16 %v354, %v353
      %v400 = vpack.c.b16 %v356, %v355
      %v401 = vpack.c.b16 %v358, %v357
      %v402 = vpack.c.b16 %v360, %v359
      %v403 = vpack.c.b16 %v362, %v361
      %v404 = vpack.c.b16 %v364, %v363
      %v405 = vpack.c.b16 %v366, %v365
      %v406 = vpack.c.b16 %v368, %v367
      %v407 = vpack.c.b16 %v370, %v369
      %v408 = vpack.c.b16 %v372, %v371
      %v409 = vpack.c.b16 %v374, %v373
      %v410 = vpack.c.b16 %v376, %v375
      %v411 = vpack.c.b16 %v378, %v377
      %v412 = vpack.c.b16 %v380, %v379
      %445 = vmatpush.bf16.msra.mxu0 %v388
      %446 = vmatpush.bf16.msra.mxu0 %v387
      %447 = vmatpush.bf16.msra.mxu0 %v386
      %448 = vmatpush.bf16.msra.mxu0 %v385
      %449 = vmatpush.bf16.msra.mxu0 %v384
      %450 = vmatpush.bf16.msra.mxu0 %v383
      %451 = vmatpush.bf16.msra.mxu0 %v382
      %452 = vmatpush.bf16.msra.mxu0 %v381
      %453 = vmatmul.bf16.gmra.mxu0 %v245
      %v454 = vpop.f32.mrf.mxu0
      %v455 = vadd.f32 %v237, %v454
      %v456 = vpop.f32.mrf.mxu0
      %457 = vdwg.mxu0
      %458 = vmatpush.bf16.msra.mxu0 %v396
      %459 = vmatpush.bf16.msra.mxu0 %v395
      %460 = vmatpush.bf16.msra.mxu0 %v394
      %461 = vmatpush.bf16.msra.mxu0 %v393
      %462 = vmatpush.bf16.msra.mxu0 %v392
      %463 = vmatpush.bf16.msra.mxu0 %v391
      %464 = vmatpush.bf16.msra.mxu0 %v390
      %465 = vmatpush.bf16.msra.mxu0 %v389
      %466 = vmatmul.bf16.gmra.mxu0 %v246
      %v467 = vpop.f32.mrf.mxu0
      %v468 = vadd.f32 %v455, %v467
      %v469 = vpop.f32.mrf.mxu0
      %470 = vdwg.mxu0
      %471 = vmatpush.bf16.msra.mxu0 %v404
      %472 = vmatpush.bf16.msra.mxu0 %v403
      %473 = vmatpush.bf16.msra.mxu0 %v402
      %474 = vmatpush.bf16.msra.mxu0 %v401
      %475 = vmatpush.bf16.msra.mxu0 %v400
      %476 = vmatpush.bf16.msra.mxu0 %v399
      %477 = vmatpush.bf16.msra.mxu0 %v398
      %478 = vmatpush.bf16.msra.mxu0 %v397
      %479 = vmatmul.bf16.gmra.mxu0 %v247
      %v480 = vpop.f32.mrf.mxu0
      %v481 = vadd.f32 %v468, %v480
      %v482 = vpop.f32.mrf.mxu0
      %483 = vdwg.mxu0
      %484 = vmatpush.bf16.msra.mxu0 %v412
      %485 = vmatpush.bf16.msra.mxu0 %v411
      %486 = vmatpush.bf16.msra.mxu0 %v410
      %487 = vmatpush.bf16.msra.mxu0 %v409
      %488 = vmatpush.bf16.msra.mxu0 %v408
      %489 = vmatpush.bf16.msra.mxu0 %v407
      %490 = vmatpush.bf16.msra.mxu0 %v406
      %491 = vmatpush.bf16.msra.mxu0 %v405
      %492 = vmatmul.bf16.gmra.mxu0 %v248
      %v493 = vpop.f32.mrf.mxu0
      %v494 = vadd.f32 %v481, %v493
      %v495 = vpop.f32.mrf.mxu0
      %496 = vdwg.mxu0
      %497 = vst [vmem:[%s168] sm:$0xff] %v494
      %p498 = scmp.lt.s32.totalorder %s14, 1
      %s499 = scalar_select %p498, %s14, 1
      %s500 = smul.addr %s499, 8
      %s501 = scalar_lea.vmem %s3, %s500
      // Predicated region
      $region33: #{patch_embed_forward.1} parent=31 // pred_check
        %p502 = pneg %p100
      $region34: #{patch_embed_forward.1} parent=31 // pred_check_branch
        %504 = sbr.rel (%p502) target = $region36
      $region35: #{patch_embed_forward.1} parent=31 // pred_region
        _
      $region36: #{patch_embed_forward.1} parent=31 // pred_fallthru
        _
    $region32: #{patch_embed_forward.1} parent=5 // pred_fallthru
      _
    %p505 = scmp.le.s32.totalorder 2, %s9
    // Predicated region
    $region37: #{patch_embed_forward.1} parent=5 // pred_check
      %p506 = pneg %p505
    $region38: #{patch_embed_forward.1} parent=5 // pred_check_branch
      %508 = sbr.rel (%p506) target = $region40
    $region39: #{patch_embed_forward.1} parent=5 // pred_region
      %s509 = ssub.s32 %s9, 2
      // Predicated region
      $region41: #{patch_embed_forward.1} parent=39 // pred_check
        %p510 = pneg %p106
      $region42: #{patch_embed_forward.1} parent=39 // pred_check_branch
        %512 = sbr.rel (%p510) target = $region44
      $region43: #{patch_embed_forward.1} parent=39 // pred_region
        %p513 = scmp.lt.s32.totalorder %s15, 1
        %s514 = scalar_select %p513, %s15, 1
        %s515 = smul.addr %s514, 8
        %s516 = scalar_lea.vmem %s3, %s515
      $region44: #{patch_embed_forward.1} parent=39 // pred_fallthru
        _
    $region40: #{patch_embed_forward.1} parent=5 // pred_fallthru
      _
  $region6: #{patch_embed_forward.1} parent=0 // loop_footer
    %s13 = sadd.s32 1, %s9
  $region7: #{patch_embed_forward.1} parent=0 // loop_footer_branch
    %8 = sbr.rel target = $region3
  $region8: #{patch_embed_forward.1} parent=0 // loop_exit
    _

</llo_original>
